<compile_context>
chip_gen: v6e
topology: v6e:2x2x1
jax: 0.10.0
libtpu: 0.0.40
codegen_flags: <defaults>
</compile_context>

<pallas_src>
import functools

import jax
import jax.numpy as jnp
from jax.experimental import pallas as pl
from jax.experimental.pallas import tpu as pltpu


def _mlp_kernel(x_ref, w1_ref, b1_ref, w2_ref, b2_ref, o_ref, *, mxu_dtype):
    # x:  (Cin,  TP)   — pixel axis on lanes
    # w1: (Chid, Cin)  b1: (Chid, 1)
    # w2: (Cout, Chid) b2: (Cout, 1)
    # o:  (Cout, TP)
    h = jnp.dot(w1_ref[...].astype(mxu_dtype), x_ref[...].astype(mxu_dtype),
                preferred_element_type=jnp.float32)
    h = jnp.clip(h + b1_ref[...], 0.0, 6.0)          # bias + ReLU6, f32 epilogue
    o = jnp.dot(w2_ref[...].astype(mxu_dtype), h.astype(mxu_dtype),
                preferred_element_type=jnp.float32)
    o_ref[...] = (o + b2_ref[...]).astype(o_ref.dtype)


# Sweepable; 16K pixels/step keeps per-step VMEM at ~6-8 MiB (well inside the
# default scoped limit on all generations) while amortizing the ~0.35 us/step
# pipeline overhead.
_DEFAULT_MAX_TILE_P = 16 * 1024


def _pick_tile_p(P, N, max_tile=_DEFAULT_MAX_TILE_P):
    """Lane-dense pixel tile (multiple of 128) capped at max_tile.

    Uses a cdiv grid with a masked ragged tail, so P does NOT need to be a
    multiple of the tile.  For N == 1, guarantees >= 2 grid blocks (v7x has two
    TensorCores) as long as each half still carries a reasonable tile.
    """
    if P <= 128:
        return P                                   # full-extent block, tiny VMEM
    tile = min(max_tile, (P // 128) * 128)         # largest lane multiple <= P
    if N == 1 and tile >= P and P >= 1024:         # single block -> split for megacore
        tile = max(128, ((P // 2) // 128) * 128)
    return tile


def mlp_forward(x_nchw, w1, b1, w2, b2, *, mxu_dtype=jnp.bfloat16,
                max_tile_p=_DEFAULT_MAX_TILE_P):
    """1x1-conv MLP forward, NCHW in / NCHW out.

    x_nchw: (N, Cin, H, W)
    w1: (Chid, Cin)   PyTorch Conv2d weight (out,in,1,1) squeezed
    b1: (Chid,)
    w2: (Cout, Chid)
    b2: (Cout,)
    mxu_dtype: dtype the matmul operands are cast to inside the kernel
               (bf16 default: single-pass MXU, f32 accumulate; use jnp.float32
               for an exact-f32 path).
    """
    N, Cin, H, W = x_nchw.shape
    Chid = w1.shape[0]
    Cout = w2.shape[0]
    P = H * W

    # Free reshape — NCHW is already (N, Cin, H*W) contiguous.
    x_flat = x_nchw.reshape(N, Cin, P)

    # Biases broadcast over the pixel (lane) axis; kept in f32 for the epilogue.
    b1_2d = b1.reshape(Chid, 1).astype(jnp.float32)
    b2_2d = b2.reshape(Cout, 1).astype(jnp.float32)

    tile_p = _pick_tile_p(P, N, max_tile_p)
    grid = (N, pl.cdiv(P, tile_p))

    kernel = functools.partial(_mlp_kernel, mxu_dtype=mxu_dtype)

    out_flat = pl.pallas_call(
        kernel,
        out_shape=jax.ShapeDtypeStruct((N, Cout, P), x_flat.dtype),
        grid_spec=pltpu.PrefetchScalarGridSpec(
            num_scalar_prefetch=0,
            grid=grid,
            in_specs=[
                pl.BlockSpec((None, Cin, tile_p), lambda n, p: (n, 0, p)),
                pl.BlockSpec((Chid, Cin), lambda n, p: (0, 0)),
                pl.BlockSpec((Chid, 1), lambda n, p: (0, 0)),
                pl.BlockSpec((Cout, Chid), lambda n, p: (0, 0)),
                pl.BlockSpec((Cout, 1), lambda n, p: (0, 0)),
            ],
            out_specs=pl.BlockSpec((None, Cout, tile_p), lambda n, p: (n, 0, p)),
        ),
        compiler_params=pltpu.CompilerParams(
            dimension_semantics=("parallel", "parallel"),
            vmem_limit_bytes=64 * 1024 * 1024,
        ),
    )(x_flat, w1, b1_2d, w2, b2_2d)

    # Free reshape back to NCHW.
    return out_flat.reshape(N, Cout, H, W)


def mlp_reference(x_nchw, w1, b1, w2, b2):
    """Pure-JAX reference of the PyTorch forward (1x1 convs, NCHW, PyTorch weight layout)."""
    h = jnp.einsum("oc,nchw->nohw", w1.astype(jnp.float32),
                   x_nchw.astype(jnp.float32)) + b1[None, :, None, None]
    h = jnp.clip(h, 0.0, 6.0)
    o = jnp.einsum("oc,nchw->nohw", w2.astype(jnp.float32),
                   h) + b2[None, :, None, None]
    return o


if __name__ == "__main__":
    # Shapes consistent with the module: in_features=4, hidden=32, out=4.
    N, Cin, H, W = 2, 4, 16, 16
    Chid, Cout = 32, Cin

    key = jax.random.PRNGKey(0)
    kx, kw1, kb1, kw2, kb2 = jax.random.split(key, 5)

    x = jax.random.normal(kx, (N, Cin, H, W), dtype=jnp.float32)
    # PyTorch Conv2d 1x1 weight layout (out_ch, in_ch).
    w1 = jax.random.normal(kw1, (Chid, Cin), dtype=jnp.float32) * 0.1
    b1 = jax.random.normal(kb1, (Chid,), dtype=jnp.float32) * 0.1
    w2 = jax.random.normal(kw2, (Cout, Chid), dtype=jnp.float32) * 0.1
    b2 = jax.random.normal(kb2, (Cout,), dtype=jnp.float32) * 0.1

    ref = mlp_reference(x, w1, b1, w2, b2)

    # Default path: bf16 MXU operands, f32 accumulate + epilogue.
    out = mlp_forward(x, w1, b1, w2, b2)
    out = jax.block_until_ready(out)
    assert out.shape == (N, Cout, H, W)
    assert jnp.allclose(out, ref, atol=1e-2, rtol=2e-2), "default (bf16-MXU) mismatch"

    # Exact f32 MXU path — tight tolerance.
    out_f32 = mlp_forward(x, w1, b1, w2, b2, mxu_dtype=jnp.float32)
    out_f32 = jax.block_until_ready(out_f32)
    assert jnp.allclose(out_f32, ref, atol=1e-5, rtol=1e-5), "f32 mismatch vs reference"

    # bf16 input/output path (halves HBM traffic) — loose tolerance.
    out_bf16 = mlp_forward(
        x.astype(jnp.bfloat16), w1.astype(jnp.bfloat16), b1,
        w2.astype(jnp.bfloat16), b2)
    out_bf16 = jax.block_until_ready(out_bf16)
    assert jnp.allclose(out_bf16.astype(jnp.float32), ref, atol=5e-2, rtol=5e-2), \
        "bf16 mismatch vs reference"

    # Ragged-P path (P = 169, not a multiple of 128): exercises the cdiv grid
    # with a masked tail block and the N==1 megacore split logic.
    x_odd = jax.random.normal(kx, (1, Cin, 13, 13), dtype=jnp.float32)
    ref_odd = mlp_reference(x_odd, w1, b1, w2, b2)
    out_odd = mlp_forward(x_odd, w1, b1, w2, b2, mxu_dtype=jnp.float32)
    out_odd = jax.block_until_ready(out_odd)
    assert jnp.allclose(out_odd, ref_odd, atol=1e-5, rtol=1e-5), "ragged-P mismatch"

    print("KERNEL_OK")
</pallas_src>

<mosaic_0001>
module attributes {stable_mosaic.version = 11 : i64} {
  func.func @_mlp_kernel(%arg0: i32, %arg1: i32, %arg2: memref<1x4x256xf32, #tpu.memory_space<vmem>>, %arg3: memref<32x4xf32, #tpu.memory_space<vmem>>, %arg4: memref<32x1xf32, #tpu.memory_space<vmem>>, %arg5: memref<4x32xf32, #tpu.memory_space<vmem>>, %arg6: memref<4x1xf32, #tpu.memory_space<vmem>>, %arg7: memref<1x4x256xf32, #tpu.memory_space<vmem>>) attributes {dimension_semantics = [#tpu.dimension_semantics<parallel>, #tpu.dimension_semantics<parallel>], iteration_bounds = array<i64: 2, 1>, scalar_prefetch = 0 : i64, scratch_operands = 0 : i64, tpu.core_type = #tpu.core_type<tc>, window_params = [{transform_indices = @transform_0, window_bounds = array<i64: 1, 4, 256>}, {pipeline_mode = #tpu.pipeline_mode<synchronous>, transform_indices = @transform_1, window_bounds = array<i64: 32, 4>}, {pipeline_mode = #tpu.pipeline_mode<synchronous>, transform_indices = @transform_2, window_bounds = array<i64: 32, 1>}, {pipeline_mode = #tpu.pipeline_mode<synchronous>, transform_indices = @transform_3, window_bounds = array<i64: 4, 32>}, {pipeline_mode = #tpu.pipeline_mode<synchronous>, transform_indices = @transform_4, window_bounds = array<i64: 4, 1>}, {transform_indices = @transform_5, window_bounds = array<i64: 1, 4, 256>}]} {
    %c0 = arith.constant 0 : index
    %c0_0 = arith.constant 0 : index
    %0 = vector.load %arg3[%c0, %c0_0] : memref<32x4xf32, #tpu.memory_space<vmem>>, vector<32x4xf32>
    %1 = arith.truncf %0 : vector<32x4xf32> to vector<32x4xbf16>
    %c0_1 = arith.constant 0 : index
    %c0_2 = arith.constant 0 : index
    %c0_3 = arith.constant 0 : index
    %2 = vector.load %arg2[%c0_1, %c0_2, %c0_3] : memref<1x4x256xf32, #tpu.memory_space<vmem>>, vector<1x4x256xf32>
    %3 = vector.shape_cast %2 : vector<1x4x256xf32> to vector<4x256xf32>
    %4 = arith.truncf %3 : vector<4x256xf32> to vector<4x256xbf16>
    %cst = arith.constant dense<0.000000e+00> : vector<32x256xf32>
    %5 = tpu.matmul %1, %4, %cst {dimension_numbers = #tpu.dot_dimension_numbers<[1], [0], [0], [1], [0, 0, 1, 1], [], []>} : vector<32x4xbf16>, vector<4x256xbf16>, vector<32x256xf32> -> vector<32x256xf32>
    %c0_4 = arith.constant 0 : index
    %c0_5 = arith.constant 0 : index
    %6 = vector.load %arg4[%c0_4, %c0_5] : memref<32x1xf32, #tpu.memory_space<vmem>>, vector<32x1xf32>
    %7 = vector.broadcast %6 : vector<32x1xf32> to vector<32x256xf32>
    %8 = arith.addf %5, %7 : vector<32x256xf32>
    %cst_6 = arith.constant 0.000000e+00 : f32
    %cst_7 = arith.constant 6.000000e+00 : f32
    %9 = vector.broadcast %cst_6 : f32 to vector<32x256xf32>
    %10 = arith.maximumf %9, %8 : vector<32x256xf32>
    %11 = vector.broadcast %cst_7 : f32 to vector<32x256xf32>
    %12 = arith.minimumf %11, %10 : vector<32x256xf32>
    %c0_8 = arith.constant 0 : index
    %c0_9 = arith.constant 0 : index
    %13 = vector.load %arg5[%c0_8, %c0_9] : memref<4x32xf32, #tpu.memory_space<vmem>>, vector<4x32xf32>
    %14 = arith.truncf %13 : vector<4x32xf32> to vector<4x32xbf16>
    %15 = arith.truncf %12 : vector<32x256xf32> to vector<32x256xbf16>
    %cst_10 = arith.constant dense<0.000000e+00> : vector<4x256xf32>
    %16 = tpu.matmul %14, %15, %cst_10 {dimension_numbers = #tpu.dot_dimension_numbers<[1], [0], [0], [1], [0, 0, 1, 1], [], []>} : vector<4x32xbf16>, vector<32x256xbf16>, vector<4x256xf32> -> vector<4x256xf32>
    %c0_11 = arith.constant 0 : index
    %c0_12 = arith.constant 0 : index
    %17 = vector.load %arg6[%c0_11, %c0_12] : memref<4x1xf32, #tpu.memory_space<vmem>>, vector<4x1xf32>
    %18 = vector.broadcast %17 : vector<4x1xf32> to vector<4x256xf32>
    %19 = arith.addf %16, %18 : vector<4x256xf32>
    %c0_13 = arith.constant 0 : index
    %c0_14 = arith.constant 0 : index
    %c0_15 = arith.constant 0 : index
    %20 = vector.load %arg7[%c0_13, %c0_14, %c0_15] : memref<1x4x256xf32, #tpu.memory_space<vmem>>, vector<1x4x256xf32>
    %21 = vector.shape_cast %20 : vector<1x4x256xf32> to vector<4x256xf32>
    %22 = vector.shape_cast %19 : vector<4x256xf32> to vector<1x4x256xf32>
    tpu.vector_store %arg7[%c0_13, %c0_14, %c0_15], %22 {strides = array<i32>} : memref<1x4x256xf32, #tpu.memory_space<vmem>>, vector<1x4x256xf32>,
    return
  }
  func.func @transform_0(%arg0: i32, %arg1: i32) -> (i32, i32, i32) {
    %c0_i32 = arith.constant 0 : i32
    %c0_i32_0 = arith.constant 0 : i32
    return %arg0, %c0_i32, %arg1 : i32, i32, i32
  }
  func.func @transform_1(%arg0: i32, %arg1: i32) -> (i32, i32) {
    %c0_i32 = arith.constant 0 : i32
    %c0_i32_0 = arith.constant 0 : i32
    %c0_i32_1 = arith.constant 0 : i32
    return %c0_i32, %c0_i32_0 : i32, i32
  }
  func.func @transform_2(%arg0: i32, %arg1: i32) -> (i32, i32) {
    %c0_i32 = arith.constant 0 : i32
    %c0_i32_0 = arith.constant 0 : i32
    %c0_i32_1 = arith.constant 0 : i32
    return %c0_i32, %c0_i32_0 : i32, i32
  }
  func.func @transform_3(%arg0: i32, %arg1: i32) -> (i32, i32) {
    %c0_i32 = arith.constant 0 : i32
    %c0_i32_0 = arith.constant 0 : i32
    %c0_i32_1 = arith.constant 0 : i32
    return %c0_i32, %c0_i32_0 : i32, i32
  }
  func.func @transform_4(%arg0: i32, %arg1: i32) -> (i32, i32) {
    %c0_i32 = arith.constant 0 : i32
    %c0_i32_0 = arith.constant 0 : i32
    %c0_i32_1 = arith.constant 0 : i32
    return %c0_i32, %c0_i32_0 : i32, i32
  }
  func.func @transform_5(%arg0: i32, %arg1: i32) -> (i32, i32, i32) {
    %c0_i32 = arith.constant 0 : i32
    %c0_i32_0 = arith.constant 0 : i32
    return %arg0, %c0_i32, %arg1 : i32, i32, i32
  }
}

</mosaic_0001>

<llo_original>
// kernel: tpu_custom_call.1
$region0: #{tpu_custom_call.1}
  #allocation0 [shape = 'u32[]', space=smem, size = 0x4, offset = 0x4, fixed_abs, tag = 'smem constant byte address 0x4 - core index']
  #allocation1 [shape = 'u32[144,128]{1,0:T(1,128)}', space=vmem, size = 0x12000, scoped, tag = 'internal scratch']
  %s0 = inlined_call_operand.vmem [shape: f32[2,4,256], index: 0, kind: input, shape index: {}]
  %s1 = inlined_call_operand.vmem [shape: f32[32,4], index: 1, kind: input, shape index: {}]
  %s2 = inlined_call_operand.vmem [shape: f32[32,1], index: 2, kind: input, shape index: {}]
  %s3 = inlined_call_operand.vmem [shape: f32[4,32], index: 3, kind: input, shape index: {}]
  %s4 = inlined_call_operand.vmem [shape: f32[4,1], index: 4, kind: input, shape index: {}]
  %s5 = inlined_call_operand.hbm [shape: f32[2,4,256], index: 5, kind: output, shape index: {}]
  %s6 = sld [smem:[#allocation0]]
  $region53: #{tpu_custom_call.1} parent=0
    _
  %s8 = ssub.s32 1, %s6
  %s9 = scalar_select 0, %s8, %s6
  $region1: #{tpu_custom_call.1} parent=0
    #allocation2 [shape = 'u8[8192]{0}', space=vmem, size = 0x2000, scoped, tag = 'output window, operand 0']
    #allocation3 [shape = 's32[2]{0}', space=sflag, size = 0x8, scoped, tag = 'scoped memory for tpu_custom_call.1']
    %10 = vsyncpa [#allocation3], 0
    %s11 = scalar_lea.sflag [#allocation3], 1
    %12 = vsyncpa %s11, 0
    loop: start=0, step=1, limit=4
    $region2: #{tpu_custom_call.1} parent=1 // loop_pre_header
      _
    $region3: #{tpu_custom_call.1} parent=1 // loop_header
      %s14 = sphi 0, %s18
      %p15 = scmp.ge.s32.totalorder %s14, 4
      %s21 = sphi 0, %s33
      %s22 = sphi 0, %s29
      %s23 = sphi 0, %s21
      %s24 = sphi 0, %s22
      %s25 = sphi 0, %s23
      %s26 = sphi 0, %s24
      %s38 = sphi 0, %s40
      %s41 = sphi 0, %s38
      %s42 = sphi 0, %s41
      %s58 = sphi 0, %s42
      %s62 = sphi 0, %s62
      %s64 = sphi 0, %s62
      %s65 = sphi 0, %s64
      %s79 = sphi 0, %s65
      %s83 = sphi 0, %s83
      %s85 = sphi 0, %s83
      %s86 = sphi 0, %s85
      %s100 = sphi 0, %s86
      %s104 = sphi 0, %s104
      %s106 = sphi 0, %s104
      %s107 = sphi 0, %s106
      %s121 = sphi 0, %s107
      %s125 = sphi 0, %s125
      %s127 = sphi 0, %s125
      %s128 = sphi 0, %s127
      %s142 = sphi 0, %s128
      %s150 = sphi 0, %s152
      %s153 = sphi 0, %s150
      %s154 = sphi 0, %s153
      %s170 = sphi 0, %s154
    $region4: #{tpu_custom_call.1} parent=1 // loop_header_branch
      %17 = sbr.rel (%p15) target = $region8
    $region5: #{tpu_custom_call.1} parent=1 // loop_body
      %s19 = ssub.s32 %s14, 1
      %s20 = ssub.s32 %s14, 2
      %s27 = sadd.s32 1, %s22
      %p28 = scmp.ge.s32.totalorder %s27, 1
      %s29 = scalar_select %p28, 0, %s27
      %s30 = sadd.s32 1, %s21
      %s31 = scalar_select %p28, %s30, %s21
      %p32 = scmp.ge.s32.totalorder %s31, 2
      %s33 = scalar_select %p32, 0, %s31
      %s34 = ssub.s32 %s21, %s33
      %s35 = ssub.s32 %s22, %s29
      %s36 = sor.u32 %s34, %s35
      %p37 = scmp.eq.s32.totalorder %s36, 0
      %s39 = sadd.s32 %s38, 1
      %s40 = scalar_select %p37, %s38, %s39
      %p43 = pneg %p37
      %p44 = scmp.eq.s32.totalorder %s14, 1
      %p45 = por %p43, %p44
      %p46 = scmp.ne.s32.totalorder %s38, %s41
      %p47 = scmp.eq.s32.totalorder %s14, 0
      %p48 = por %p46, %p47
      %p49 = scmp.ne.s32.totalorder %s38, %s41
      %p50 = scmp.eq.s32.totalorder %s19, 1
      %p51 = por %p49, %p50
      %p52 = scmp.ne.s32.totalorder %s41, %s42
      %p53 = scmp.eq.s32.totalorder %s19, 0
      %p54 = por %p52, %p53
      %p55 = scmp.ne.s32.totalorder %s41, %s42
      %p56 = scmp.eq.s32.totalorder %s20, 1
      %p57 = por %p55, %p56
      %p59 = scmp.ne.s32.totalorder %s42, %s58
      %p60 = scmp.eq.s32.totalorder %s20, 0
      %p61 = por %p59, %p60
      %s63 = sadd.s32 %s62, 1
      %p66 = scmp.eq.s32.totalorder %s14, 1
      %p67 = scmp.ne.s32.totalorder %s62, %s64
      %p68 = scmp.eq.s32.totalorder %s14, 0
      %p69 = por %p67, %p68
      %p70 = scmp.ne.s32.totalorder %s62, %s64
      %p71 = scmp.eq.s32.totalorder %s19, 1
      %p72 = por %p70, %p71
      %p73 = scmp.ne.s32.totalorder %s64, %s65
      %p74 = scmp.eq.s32.totalorder %s19, 0
      %p75 = por %p73, %p74
      %p76 = scmp.ne.s32.totalorder %s64, %s65
      %p77 = scmp.eq.s32.totalorder %s20, 1
      %p78 = por %p76, %p77
      %p80 = scmp.ne.s32.totalorder %s65, %s79
      %p81 = scmp.eq.s32.totalorder %s20, 0
      %p82 = por %p80, %p81
      %s84 = sadd.s32 %s83, 1
      %p87 = scmp.eq.s32.totalorder %s14, 1
      %p88 = scmp.ne.s32.totalorder %s83, %s85
      %p89 = scmp.eq.s32.totalorder %s14, 0
      %p90 = por %p88, %p89
      %p91 = scmp.ne.s32.totalorder %s83, %s85
      %p92 = scmp.eq.s32.totalorder %s19, 1
      %p93 = por %p91, %p92
      %p94 = scmp.ne.s32.totalorder %s85, %s86
      %p95 = scmp.eq.s32.totalorder %s19, 0
      %p96 = por %p94, %p95
      %p97 = scmp.ne.s32.totalorder %s85, %s86
      %p98 = scmp.eq.s32.totalorder %s20, 1
      %p99 = por %p97, %p98
      %p101 = scmp.ne.s32.totalorder %s86, %s100
      %p102 = scmp.eq.s32.totalorder %s20, 0
      %p103 = por %p101, %p102
      %s105 = sadd.s32 %s104, 1
      %p108 = scmp.eq.s32.totalorder %s14, 1
      %p109 = scmp.ne.s32.totalorder %s104, %s106
      %p110 = scmp.eq.s32.totalorder %s14, 0
      %p111 = por %p109, %p110
      %p112 = scmp.ne.s32.totalorder %s104, %s106
      %p113 = scmp.eq.s32.totalorder %s19, 1
      %p114 = por %p112, %p113
      %p115 = scmp.ne.s32.totalorder %s106, %s107
      %p116 = scmp.eq.s32.totalorder %s19, 0
      %p117 = por %p115, %p116
      %p118 = scmp.ne.s32.totalorder %s106, %s107
      %p119 = scmp.eq.s32.totalorder %s20, 1
      %p120 = por %p118, %p119
      %p122 = scmp.ne.s32.totalorder %s107, %s121
      %p123 = scmp.eq.s32.totalorder %s20, 0
      %p124 = por %p122, %p123
      %s126 = sadd.s32 %s125, 1
      %p129 = scmp.eq.s32.totalorder %s14, 1
      %p130 = scmp.ne.s32.totalorder %s125, %s127
      %p131 = scmp.eq.s32.totalorder %s14, 0
      %p132 = por %p130, %p131
      %p133 = scmp.ne.s32.totalorder %s125, %s127
      %p134 = scmp.eq.s32.totalorder %s19, 1
      %p135 = por %p133, %p134
      %p136 = scmp.ne.s32.totalorder %s127, %s128
      %p137 = scmp.eq.s32.totalorder %s19, 0
      %p138 = por %p136, %p137
      %p139 = scmp.ne.s32.totalorder %s127, %s128
      %p140 = scmp.eq.s32.totalorder %s20, 1
      %p141 = por %p139, %p140
      %p143 = scmp.ne.s32.totalorder %s128, %s142
      %p144 = scmp.eq.s32.totalorder %s20, 0
      %p145 = por %p143, %p144
      %s146 = ssub.s32 %s21, %s33
      %s147 = ssub.s32 %s22, %s29
      %s148 = sor.u32 %s146, %s147
      %p149 = scmp.eq.s32.totalorder %s148, 0
      %s151 = sadd.s32 %s150, 1
      %s152 = scalar_select %p149, %s150, %s151
      %p155 = pneg %p149
      %p156 = scmp.eq.s32.totalorder %s14, 1
      %p157 = por %p155, %p156
      %p158 = scmp.ne.s32.totalorder %s150, %s153
      %p159 = scmp.eq.s32.totalorder %s14, 0
      %p160 = por %p158, %p159
      %p161 = scmp.ne.s32.totalorder %s150, %s153
      %p162 = scmp.eq.s32.totalorder %s19, 1
      %p163 = por %p161, %p162
      %p164 = scmp.ne.s32.totalorder %s153, %s154
      %p165 = scmp.eq.s32.totalorder %s19, 0
      %p166 = por %p164, %p165
      %p167 = scmp.ne.s32.totalorder %s153, %s154
      %p168 = scmp.eq.s32.totalorder %s20, 1
      %p169 = por %p167, %p168
      %p171 = scmp.ne.s32.totalorder %s154, %s170
      %p172 = scmp.eq.s32.totalorder %s20, 0
      %p173 = por %p171, %p172
      %p174 = scmp.le.s32.totalorder 1, %s14
      %p175 = scmp.lt.s32.totalorder %s14, 3
      %p176 = pnand %p174, %p175
      %p177 = pneg %p176
      // Predicated region
      $region9: #{tpu_custom_call.1} parent=5 // pred_check
        _
      $region10: #{tpu_custom_call.1} parent=5 // pred_check_branch
        %179 = sbr.rel (%p176) target = $region12
      $region11: #{tpu_custom_call.1} parent=5 // pred_region
        %s180 = ssub.s32 %s14, 1
        // Predicated region
        $region13: #{tpu_custom_call.1} parent=11 // pred_check
          %p181 = pneg %p75
        $region14: #{tpu_custom_call.1} parent=11 // pred_check_branch
          %183 = sbr.rel (%p181) target = $region16
        $region15: #{tpu_custom_call.1} parent=11 // pred_region
          _
        $region16: #{tpu_custom_call.1} parent=11 // pred_fallthru
          _
        // Predicated region
        $region17: #{tpu_custom_call.1} parent=11 // pred_check
          %p184 = pneg %p96
        $region18: #{tpu_custom_call.1} parent=11 // pred_check_branch
          %186 = sbr.rel (%p184) target = $region20
        $region19: #{tpu_custom_call.1} parent=11 // pred_region
          _
        $region20: #{tpu_custom_call.1} parent=11 // pred_fallthru
          _
        // Predicated region
        $region21: #{tpu_custom_call.1} parent=11 // pred_check
          %p187 = pneg %p117
        $region22: #{tpu_custom_call.1} parent=11 // pred_check_branch
          %189 = sbr.rel (%p187) target = $region24
        $region23: #{tpu_custom_call.1} parent=11 // pred_region
          _
        $region24: #{tpu_custom_call.1} parent=11 // pred_fallthru
          _
        // Predicated region
        $region25: #{tpu_custom_call.1} parent=11 // pred_check
          %p190 = pneg %p138
        $region26: #{tpu_custom_call.1} parent=11 // pred_check_branch
          %192 = sbr.rel (%p190) target = $region28
        $region27: #{tpu_custom_call.1} parent=11 // pred_region
          _
        $region28: #{tpu_custom_call.1} parent=11 // pred_fallthru
          _
      $region12: #{tpu_custom_call.1} parent=5 // pred_fallthru
        _
      %p193 = scmp.lt.s32.totalorder %s14, 2
      // Predicated region
      $region29: #{tpu_custom_call.1} parent=5 // pred_check
        %p194 = pneg %p193
      $region30: #{tpu_custom_call.1} parent=5 // pred_check_branch
        %196 = sbr.rel (%p194) target = $region32
      $region31: #{tpu_custom_call.1} parent=5 // pred_region
        // Predicated region
        $region33: #{tpu_custom_call.1} parent=31 // pred_check
          %p197 = pneg %p48
        $region34: #{tpu_custom_call.1} parent=31 // pred_check_branch
          %199 = sbr.rel (%p197) target = $region36
        $region35: #{tpu_custom_call.1} parent=31 // pred_region
          %s200 = smul.u32 2, %s22
          %p201 = scmp.lt.s32.totalorder %s21, 1
          %s202 = scalar_select %p201, %s21, 1
          %p203 = scmp.lt.s32.totalorder %s200, 1
          %s204 = scalar_select %p203, %s200, 1
          %s205 = smul.addr %s202, 2
          %s206 = sadd.s32 %s204, %s205
          %s207 = smul.addr %s206, 4
          %s208 = scalar_lea.vmem %s0, %s207
          %s209 = smul.u32 2, %s22
        $region36: #{tpu_custom_call.1} parent=31 // pred_fallthru
          _
      $region32: #{tpu_custom_call.1} parent=5 // pred_fallthru
        _
      %p210 = scmp.le.s32.totalorder 1, %s14
      %p211 = scmp.lt.s32.totalorder %s14, 3
      %p212 = pnand %p210, %p211
      %p213 = pneg %p212
      // Predicated region
      $region37: #{tpu_custom_call.1} parent=5 // pred_check
        _
      $region38: #{tpu_custom_call.1} parent=5 // pred_check_branch
        %215 = sbr.rel (%p212) target = $region40
      $region39: #{tpu_custom_call.1} parent=5 // pred_region
        %s216 = ssub.s32 %s14, 1
        %s217 = smul.u32 2, %s24
        %p218 = scmp.lt.s32.totalorder %s23, 1
        %s219 = scalar_select %p218, %s23, 1
        %p220 = scmp.lt.s32.totalorder %s217, 1
        %s221 = scalar_select %p220, %s217, 1
        %s222 = smul.addr %s219, 2
        %s223 = sadd.s32 %s221, %s222
        %s224 = smul.addr %s223, 4
        %s225 = scalar_lea.vmem %s0, %s224
        %p226 = pneg %p54
        %p227 = pneg %p51
        %p228 = pneg %p75
        %p229 = pneg %p72
        %p230 = pneg %p96
        %p231 = pneg %p93
        %p232 = pneg %p117
        %p233 = pneg %p114
        %p234 = pneg %p138
        %p235 = pneg %p135
        %p236 = pneg %p166
        %p237 = pneg %p163
        %s238 = sand.u32 %s153, 1
        %s239 = scalar_lea.sflag [#allocation3], %s238
        %s240 = sand.u32 %s153, 1
        %s241 = smul.addr %s240, 8
        %s242 = scalar_lea.vmem [#allocation2], %s241
        %s243 = smul.u32 2, %s24
        %p244 = scmp.lt.s32.totalorder %s23, 1
        %s245 = scalar_select %p244, %s23, 1
        %p246 = scmp.lt.s32.totalorder %s243, 1
        %s247 = scalar_select %p246, %s243, 1
        %s248 = smul.addr %s245, 2
        %s249 = sadd.s32 %s247, %s248
        %s250 = smul.addr %s249, 4
        %s251 = scalar_lea.vmem %s0, %s250
        %s252 = smul.u32 2, %s24
        %s253 = smul.u32 2, %s24
        %v255 = vld [vmem:[%s1] sm:$0xff]
        %v256 = vld [vmem:[%s1 + $0x8] sm:$0xff]
        %v257 = vld [vmem:[%s1 + $0x10] sm:$0xff]
        %v258 = vld [vmem:[%s1 + $0x18] sm:$0xff]
        %v259 = vpack.c.bf16 %v256, %v255
        %v260 = vpack.c.bf16 %v258, %v257
        %v261 = vld [vmem:[%s251] sm:$0xff]
        %v263 = vcombine.high %v261, %v261
        %v265 = vpack.c.bf16 %v261, %v261
        %v266 = vpack.c.bf16 %v263, %v263
        %v267 = vld [vmem:[%s2] sm:$0xff]
        %v268 = vld [vmem:[%s2 + $0x8] sm:$0xff]
        %v269 = vld [vmem:[%s2 + $0x10] sm:$0xff]
        %v270 = vld [vmem:[%s2 + $0x18] sm:$0xff]
        %272 = vset.pattern.permute.xlu0 0
        %273 = vperm.xlu0 %272, %v267
        %v274 = vpop.permute.xlu0 %273
        %277 = vset.pattern.permute.xlu0 0
        %278 = vperm.xlu0 %277, %v268
        %v279 = vpop.permute.xlu0 %278
        %282 = vset.pattern.permute.xlu0 0
        %283 = vperm.xlu0 %282, %v269
        %v284 = vpop.permute.xlu0 %283
        %287 = vset.pattern.permute.xlu0 0
        %288 = vperm.xlu0 %287, %v270
        %v289 = vpop.permute.xlu0 %288
        %vm291 = vcmask 31744
        %v293 = vsel %vm291, %v259, 0
        %v296 = vsel %vm291, %v260, 0
        %vm298 = vcmask 1041408
        %v300 = vsel %vm298, %v265, 0
        %v303 = vsel %vm298, %v266, 0
        %305 = vmatprep.subr.bf16.mxu0 0
        %306 = vmatpush1.bf16.msra.mxu0 0
        %307 = vmatprep.subr.bf16.mxu0 0
        %308 = vmatpush1.bf16.msra.mxu0 0
        %309 = vmatprep.subr.bf16.mxu0 0
        %310 = vmatpush1.bf16.msra.mxu0 0
        %311 = vmatprep.subr.bf16.mxu0 0
        %312 = vmatpush1.bf16.msra.mxu0 0
        %313 = vmatprep.subr.bf16.mxu0 0
        %314 = vmatpush1.bf16.msra.mxu0 0
        %315 = vmatprep.subr.bf16.mxu0 0
        %316 = vmatpush1.bf16.msra.mxu0 0
        %317 = vmatprep.subr.bf16.mxu0 0
        %318 = vmatpush1.bf16.msra.mxu0 0
        %319 = vmatprep.subr.bf16.mxu0 %v303
        %320 = vmatpush1.bf16.msra.mxu0 %v300
        %321 = vmatprep.subr.bf16.mxu0 0
        %322 = vmatpush2.bf16.msra.mxu0 0
        %323 = vmatprep.subr.bf16.mxu0 0
        %324 = vmatpush2.bf16.msra.mxu0 0
        %325 = vmatprep.subr.bf16.mxu0 0
        %326 = vmatpush2.bf16.msra.mxu0 0
        %327 = vmatprep.subr.bf16.mxu0 0
        %328 = vmatpush2.bf16.msra.mxu0 0
        %329 = vmatprep.subr.bf16.mxu0 0
        %330 = vmatpush2.bf16.msra.mxu0 0
        %331 = vmatprep.subr.bf16.mxu0 0
        %332 = vmatpush2.bf16.msra.mxu0 0
        %333 = vmatprep.subr.bf16.mxu0 0
        %334 = vmatpush2.bf16.msra.mxu0 0
        %335 = vmatprep.subr.bf16.mxu0 0
        %336 = vmatpush2.bf16.msra.mxu0 0
        %337 = vmatprep.mubr.bf16.mxu0 0
        %338 = vmatmul.mubr.bf16.gmra.mxu0 %v293
        %v339 = vpop.f32.mrf.mxu0
        %v340 = vadd.f32 %v274, %v339
        %v341 = vpop.f32.mrf.mxu0
        %v342 = vadd.f32 %v274, %v341
        %v343 = vpop.f32.mrf.mxu0
        %v344 = vadd.f32 %v279, %v343
        %v345 = vpop.f32.mrf.mxu0
        %v346 = vadd.f32 %v279, %v345
        %347 = vmatprep.mubr.bf16.mxu0 0
        %348 = vmatmul.mubr.bf16.gmra.mxu0 %v296
        %v349 = vpop.f32.mrf.mxu0
        %v350 = vadd.f32 %v284, %v349
        %v351 = vpop.f32.mrf.mxu0
        %v352 = vadd.f32 %v284, %v351
        %v353 = vpop.f32.mrf.mxu0
        %v354 = vadd.f32 %v289, %v353
        %v355 = vpop.f32.mrf.mxu0
        %v356 = vadd.f32 %v289, %v355
        %357 = vdwg.mxu0
        %v358 = vmax.f32 %v340, 0.0
        %v359 = vmax.f32 %v342, 0.0
        %v360 = vmax.f32 %v344, 0.0
        %v361 = vmax.f32 %v346, 0.0
        %v362 = vmax.f32 %v350, 0.0
        %v363 = vmax.f32 %v352, 0.0
        %v364 = vmax.f32 %v354, 0.0
        %v365 = vmax.f32 %v356, 0.0
        %v366 = vmin.f32 %v358, 6.0
        %v367 = vmin.f32 %v359, 6.0
        %v368 = vmin.f32 %v360, 6.0
        %v369 = vmin.f32 %v361, 6.0
        %v370 = vmin.f32 %v362, 6.0
        %v371 = vmin.f32 %v363, 6.0
        %v372 = vmin.f32 %v364, 6.0
        %v373 = vmin.f32 %v365, 6.0
        %v374 = vld [vmem:[%s3] sm:$0xf]
        %v375 = vpack.c.bf16 %v374, %v374
        %v376 = vpack.c.bf16 %v368, %v366
        %v377 = vpack.c.bf16 %v369, %v367
        %v378 = vpack.c.bf16 %v372, %v370
        %v379 = vpack.c.bf16 %v373, %v371
        %v380 = vld [vmem:[%s4] sm:$0xf]
        %382 = vset.pattern.permute.xlu0 0
        %383 = vperm.xlu0 %382, %v380
        %v384 = vpop.permute.xlu0 %383
        %vm386 = vcmask 261120
        %v388 = vsel %vm386, %v375, 0
        %390 = vmatprep.subr.bf16.mxu0 0
        %391 = vmatpush1.bf16.msra.mxu0 0
        %392 = vmatprep.subr.bf16.mxu0 0
        %393 = vmatpush1.bf16.msra.mxu0 0
        %394 = vmatprep.subr.bf16.mxu0 0
        %395 = vmatpush1.bf16.msra.mxu0 0
        %396 = vmatprep.subr.bf16.mxu0 0
        %397 = vmatpush1.bf16.msra.mxu0 0
        %398 = vmatprep.subr.bf16.mxu0 0
        %399 = vmatpush1.bf16.msra.mxu0 0
        %400 = vmatprep.subr.bf16.mxu0 0
        %401 = vmatpush1.bf16.msra.mxu0 0
        %402 = vmatprep.subr.bf16.mxu0 %v379
        %403 = vmatpush1.bf16.msra.mxu0 %v378
        %404 = vmatprep.subr.bf16.mxu0 %v377
        %405 = vmatpush1.bf16.msra.mxu0 %v376
        %406 = vmatprep.subr.bf16.mxu0 0
        %407 = vmatpush2.bf16.msra.mxu0 0
        %408 = vmatprep.subr.bf16.mxu0 0
        %409 = vmatpush2.bf16.msra.mxu0 0
        %410 = vmatprep.subr.bf16.mxu0 0
        %411 = vmatpush2.bf16.msra.mxu0 0
        %412 = vmatprep.subr.bf16.mxu0 0
        %413 = vmatpush2.bf16.msra.mxu0 0
        %414 = vmatprep.subr.bf16.mxu0 0
        %415 = vmatpush2.bf16.msra.mxu0 0
        %416 = vmatprep.subr.bf16.mxu0 0
        %417 = vmatpush2.bf16.msra.mxu0 0
        %418 = vmatprep.subr.bf16.mxu0 0
        %419 = vmatpush2.bf16.msra.mxu0 0
        %420 = vmatprep.subr.bf16.mxu0 0
        %421 = vmatpush2.bf16.msra.mxu0 0
        %422 = vmatprep.mubr.bf16.mxu0 0
        %423 = vmatmul.mubr.bf16.gmra.mxu0 %v388
        %v424 = vpop.f32.mrf.mxu0
        %v425 = vadd.f32 %v384, %v424
        %v426 = vpop.f32.mrf.mxu0
        %v427 = vadd.f32 %v384, %v426
        %v428 = vpop.f32.mrf.mxu0
        %v429 = vpop.f32.mrf.mxu0
        %430 = vdwg.mxu0
        %v433 = vcombine.low %v425, %v427
        %435 = vst [vmem:[%s242] sm:$0xff] %v433
        %s436 = sand.u32 %s153, 1
        %s437 = scalar_lea.sflag [#allocation3], %s436
        %s438 = sand.u32 %s153, 1
        %s439 = smul.addr %s438, 8
        %s440 = scalar_lea.vmem [#allocation2], %s439
        // Predicated region
        $region41: #{tpu_custom_call.1} parent=39 // pred_check
          %p441 = pneg %p163
        $region42: #{tpu_custom_call.1} parent=39 // pred_check_branch
          %443 = sbr.rel (%p441) target = $region44
        $region43: #{tpu_custom_call.1} parent=39 // pred_region
          %s444 = smul.u32 2, %s24
          %s446 = ssub.s32 128, 128
          %447 = vsyncadd %s437, %s446
          %s448 = smul.addr %s23, 2
          %s449 = sadd.s32 %s444, %s448
          %s450 = smul.addr %s449, 64
          %s451 = scalar_lea.hbm %s5, %s450
          %s453 = sshll.u32 %s440, 4
          %s454 = int_to_ptr.vmem [resolvable:$true] %s453
          %456 = dma.vmem_to_hbm [thread:$0]  %s454, 128, %s451, %s437
        $region44: #{tpu_custom_call.1} parent=39 // pred_fallthru
          _
      $region40: #{tpu_custom_call.1} parent=5 // pred_fallthru
        _
      %p457 = scmp.le.s32.totalorder 2, %s14
      // Predicated region
      $region45: #{tpu_custom_call.1} parent=5 // pred_check
        %p458 = pneg %p457
      $region46: #{tpu_custom_call.1} parent=5 // pred_check_branch
        %460 = sbr.rel (%p458) target = $region48
      $region47: #{tpu_custom_call.1} parent=5 // pred_region
        %s461 = ssub.s32 %s14, 2
        // Predicated region
        $region49: #{tpu_custom_call.1} parent=47 // pred_check
          %p462 = pneg %p169
        $region50: #{tpu_custom_call.1} parent=47 // pred_check_branch
          %464 = sbr.rel (%p462) target = $region52
        $region51: #{tpu_custom_call.1} parent=47 // pred_region
          %s465 = sand.u32 %s154, 1
          %s466 = scalar_lea.sflag [#allocation3], %s465
          %s467 = sand.u32 %s154, 1
          %s468 = smul.addr %s467, 8
          %s469 = scalar_lea.vmem [#allocation2], %s468
          %470 = dma.done %s466, 128
        $region52: #{tpu_custom_call.1} parent=47 // pred_fallthru
          _
      $region48: #{tpu_custom_call.1} parent=5 // pred_fallthru
        _
    $region6: #{tpu_custom_call.1} parent=1 // loop_footer
      %s18 = sadd.s32 1, %s14
    $region7: #{tpu_custom_call.1} parent=1 // loop_footer_branch
      %13 = sbr.rel target = $region3
    $region8: #{tpu_custom_call.1} parent=1 // loop_exit
      _
    %471 = vsyncpa [#allocation3], 1
    %s472 = scalar_lea.sflag [#allocation3], 1
    %473 = vsyncpa %s472, 1

</llo_original>
